<compile_context>
chip_gen: v6e
topology: v6e:2x2x1
jax: 0.10.0
libtpu: 0.0.40
codegen_flags: <defaults>
</compile_context>

<pallas_src>
import jax
import jax.numpy as jnp
from jax.experimental import pallas as pl
from jax.experimental.pallas import tpu as pltpu

D_IN, D_H1, D_H2, D_OUT = 1024, 256, 128, 1
_HIGHEST = jax.lax.Precision.HIGHEST  # keep fold & reference in true f32


def head_kernel(x_ref, w_ref, b_ref, o_ref):
    # Folded head: logits = sum(x * w_eff_row, lanes) + b_eff ; sigmoid.
    # VPU multiply (w row broadcast over sublanes) + XLU lane reduction; the
    # sigmoid exp goes to the EUP slot.  Everything f32.
    prod = x_ref[...] * w_ref[...]                                   # (bm, 1024)
    logits = jnp.sum(prod, axis=-1, keepdims=True) + b_ref[...]      # (bm, 1)
    o_ref[...] = jax.nn.sigmoid(logits)


def _round_up(x, m):
    return (x + m - 1) // m * m


def _pick_bm(B):
    """Batch tile: as big as useful, but >=2 grid steps once B > 16."""
    if B <= 16:
        return _round_up(B, 8)
    # >=2 "parallel" steps so both v7x TensorCores get work; cap at 1024 rows
    # (4 MiB f32 x-tile, double-buffered ~8 MiB -> fits every chip's default
    # scoped VMEM).  On single-TC v5e/v6e the extra step costs ~0.35 us.
    return min(1024, _round_up(pl.cdiv(B, 2), 8))


def fold_head_params(w1, b1, w2, b2, w3, b3):
    """One-time algebraic fold of the three Linears (dropout = identity).

    Returns (w_eff_row [1, 1024] f32, b_eff [1, 1] f32).
    """
    w23 = jnp.dot(w2, w3, precision=_HIGHEST)                 # (256, 1)
    w_eff = jnp.dot(w1, w23, precision=_HIGHEST)              # (1024, 1)
    b_eff = (jnp.dot(b1, w23, precision=_HIGHEST)
             + jnp.dot(b2, w3, precision=_HIGHEST) + b3)      # (1, 1)
    return (w_eff.reshape(1, D_IN).astype(jnp.float32),
            b_eff.reshape(1, D_OUT).astype(jnp.float32))


def transformer_head(pooled_output, w_eff_row, b_eff, *, bm=None):
    """Fused folded head: sigmoid(x @ w_eff + b_eff), x stays f32."""
    B = pooled_output.shape[0]
    if bm is None:
        bm = _pick_bm(B)
    assert bm % 8 == 0, "batch tile must be a multiple of the 8-row f32 sublane"
    grid = (pl.cdiv(B, bm),)  # tail tile handled by OOB read/write masking

    x = pooled_output.astype(jnp.float32)       # no-op for f32 inputs
    rep = lambda i: (0, 0)                      # folded weights: one block, resident

    cost = pl.CostEstimate(
        flops=2 * B * D_IN + B,                 # per-row mul+add reduce, + bias
        transcendentals=B,                      # sigmoid exp
        bytes_accessed=(B * D_IN * 4            # x (f32, read once)
                        + D_IN * 4 + 4          # w_eff row + b_eff
                        + B * D_OUT * 4),       # output
    )

    return pl.pallas_call(
        head_kernel,
        out_shape=jax.ShapeDtypeStruct((B, D_OUT), jnp.float32),
        grid_spec=pltpu.PrefetchScalarGridSpec(
            num_scalar_prefetch=0,
            grid=grid,
            in_specs=[
                pl.BlockSpec((bm, D_IN), lambda i: (i, 0)),   # pooled_output tile
                pl.BlockSpec((1, D_IN), rep),                 # folded weight row
                pl.BlockSpec((1, D_OUT), rep),                # folded bias
            ],
            out_specs=pl.BlockSpec((bm, D_OUT), lambda i: (i, 0)),
        ),
        compiler_params=pltpu.CompilerParams(
            dimension_semantics=("parallel",),  # >=2 tiles shard across v7x TCs
        ),
        cost_estimate=cost,
    )(x, w_eff_row, b_eff)


def init_params(key):
    """Deterministic init matching the nn.Linear shapes (stored as [in, out])."""
    k1, k2, k3, k4, k5, k6 = jax.random.split(key, 6)

    def linear_init(kw, kb, fan_in, fan_out):
        bound = 1.0 / jnp.sqrt(fan_in)
        w = jax.random.uniform(kw, (fan_in, fan_out), jnp.float32, -bound, bound)
        b = jax.random.uniform(kb, (1, fan_out), jnp.float32, -bound, bound)
        return w, b

    w1, b1 = linear_init(k1, k2, D_IN, D_H1)    # dense_layer_1: 1024 -> 256
    w2, b2 = linear_init(k3, k4, D_H1, D_H2)    # dense_layer_2: 256 -> 128
    w3, b3 = linear_init(k5, k6, D_H2, D_OUT)   # cls_layer:     128 -> 1
    return w1, b1, w2, b2, w3, b3


def reference_head(x, w1, b1, w2, b2, w3, b3):
    """Plain-JAX layered reference (f32, dropout = identity), per-layer order."""
    h1 = jnp.dot(x, w1, precision=_HIGHEST) + b1
    h2 = jnp.dot(h1, w2, precision=_HIGHEST) + b2
    logits = jnp.dot(h2, w3, precision=_HIGHEST) + b3
    return jax.nn.sigmoid(logits)


if __name__ == "__main__":
    key = jax.random.PRNGKey(0)
    k_x, k_p = jax.random.split(key)
    params = init_params(k_p)
    # One-time weight fold (done at "parameter time", not per forward call).
    w_eff_row, b_eff = fold_head_params(*params)

    # Synthetic stand-in for the BART-large pooler_output [B, 1024].
    B = 32
    pooled = jax.random.normal(k_x, (B, D_IN), jnp.float32)
    out = jax.block_until_ready(transformer_head(pooled, w_eff_row, b_eff))
    ref = reference_head(pooled, *params)
    assert out.shape == (B, D_OUT)
    assert jnp.allclose(out, ref, atol=1e-3, rtol=1e-3)

    # Ragged batch: grid = cdiv(B, bm) with an overhanging tail tile.
    B2 = 20
    pooled2 = jax.random.normal(k_x, (B2, D_IN), jnp.float32)
    out2 = jax.block_until_ready(
        transformer_head(pooled2, w_eff_row, b_eff, bm=16))
    ref2 = reference_head(pooled2, *params)
    assert out2.shape == (B2, D_OUT)
    assert jnp.allclose(out2, ref2, atol=1e-3, rtol=1e-3)

    print("KERNEL_OK")
</pallas_src>

<mosaic_0001>
module attributes {stable_mosaic.version = 11 : i64} {
  func.func @head_kernel(%arg0: i32, %arg1: memref<16x1024xf32, #tpu.memory_space<vmem>>, %arg2: memref<1x1024xf32, #tpu.memory_space<vmem>>, %arg3: memref<1x1xf32, #tpu.memory_space<vmem>>, %arg4: memref<16x1xf32, #tpu.memory_space<vmem>>) attributes {dimension_semantics = [#tpu.dimension_semantics<parallel>], iteration_bounds = array<i64: 2>, scalar_prefetch = 0 : i64, scratch_operands = 0 : i64, tpu.core_type = #tpu.core_type<tc>, window_params = [{transform_indices = @transform_0, window_bounds = array<i64: 16, 1024>}, {pipeline_mode = #tpu.pipeline_mode<synchronous>, transform_indices = @transform_1, window_bounds = array<i64: 1, 1024>}, {pipeline_mode = #tpu.pipeline_mode<synchronous>, transform_indices = @transform_2, window_bounds = array<i64: 1, 1>}, {transform_indices = @transform_3, window_bounds = array<i64: 16, 1>}]} {
    %c0 = arith.constant 0 : index
    %c0_0 = arith.constant 0 : index
    %0 = vector.load %arg1[%c0, %c0_0] : memref<16x1024xf32, #tpu.memory_space<vmem>>, vector<16x1024xf32>
    %c0_1 = arith.constant 0 : index
    %c0_2 = arith.constant 0 : index
    %1 = vector.load %arg2[%c0_1, %c0_2] : memref<1x1024xf32, #tpu.memory_space<vmem>>, vector<1x1024xf32>
    %2 = vector.broadcast %1 : vector<1x1024xf32> to vector<16x1024xf32>
    %3 = arith.mulf %0, %2 : vector<16x1024xf32>
    %cst = arith.constant dense<0.000000e+00> : vector<16xf32>
    %4 = vector.multi_reduction <add>, %3, %cst [1] : vector<16x1024xf32> to vector<16xf32>
    %5 = vector.shape_cast %4 : vector<16xf32> to vector<16x1xf32>
    %c0_3 = arith.constant 0 : index
    %c0_4 = arith.constant 0 : index
    %6 = vector.load %arg3[%c0_3, %c0_4] : memref<1x1xf32, #tpu.memory_space<vmem>>, vector<1x1xf32>
    %7 = vector.broadcast %6 : vector<1x1xf32> to vector<16x1xf32>
    %8 = arith.addf %5, %7 : vector<16x1xf32>
    %9 = arith.negf %8 : vector<16x1xf32>
    %10 = math.exp %9 : vector<16x1xf32>
    %cst_5 = arith.constant 1.000000e+00 : f32
    %11 = vector.broadcast %cst_5 : f32 to vector<16x1xf32>
    %12 = arith.addf %11, %10 : vector<16x1xf32>
    %13 = arith.divf %11, %12 : vector<16x1xf32>
    %c0_6 = arith.constant 0 : index
    %c0_7 = arith.constant 0 : index
    %14 = vector.load %arg4[%c0_6, %c0_7] : memref<16x1xf32, #tpu.memory_space<vmem>>, vector<16x1xf32>
    tpu.vector_store %arg4[%c0_6, %c0_7], %13 {strides = array<i32>} : memref<16x1xf32, #tpu.memory_space<vmem>>, vector<16x1xf32>,
    return
  }
  func.func @transform_0(%arg0: i32) -> (i32, i32) {
    %c0_i32 = arith.constant 0 : i32
    %c0_i32_0 = arith.constant 0 : i32
    return %arg0, %c0_i32 : i32, i32
  }
  func.func @transform_1(%arg0: i32) -> (i32, i32) {
    %c0_i32 = arith.constant 0 : i32
    %c0_i32_0 = arith.constant 0 : i32
    %c0_i32_1 = arith.constant 0 : i32
    return %c0_i32, %c0_i32_0 : i32, i32
  }
  func.func @transform_2(%arg0: i32) -> (i32, i32) {
    %c0_i32 = arith.constant 0 : i32
    %c0_i32_0 = arith.constant 0 : i32
    %c0_i32_1 = arith.constant 0 : i32
    return %c0_i32, %c0_i32_0 : i32, i32
  }
  func.func @transform_3(%arg0: i32) -> (i32, i32) {
    %c0_i32 = arith.constant 0 : i32
    %c0_i32_0 = arith.constant 0 : i32
    return %arg0, %c0_i32 : i32, i32
  }
}

</mosaic_0001>

<llo_original>
// kernel: tpu_custom_call.1
$region0: #{tpu_custom_call.1}
  #allocation0 [shape = 'u32[]', space=smem, size = 0x4, offset = 0x4, fixed_abs, tag = 'smem constant byte address 0x4 - core index']
  #allocation1 [shape = 'u32[144,128]{1,0:T(1,128)}', space=vmem, size = 0x12000, scoped, tag = 'internal scratch']
  #allocation2 [shape = 'f32[1,1]{1,0:T(1,128)S(1)}', space=vmem, size = 0x200, scoped, tag = 'scoped memory for tpu_custom_call.1']
  %s0 = inlined_call_operand.hbm [shape: f32[32,1024], index: 0, kind: input, shape index: {}]
  %s1 = inlined_call_operand.hbm [shape: f32[1,1024], index: 1, kind: input, shape index: {}]
  %s2 = inlined_call_operand.<no memory space> [shape: f32[1,1], index: 2, kind: input, shape index: {}]
  %s3 = inlined_call_operand.vmem [shape: f32[32,1], index: 3, kind: output, shape index: {}]
  %s4 = sld [smem:[#allocation0]]
  $region53: #{tpu_custom_call.1} parent=0
    _
  %s6 = ssub.s32 1, %s4
  %s7 = scalar_select 0, %s6, %s4
  %v8 = vstv %s2
  %9 = vst [vmem:[#allocation2] sm:$0x1] %v8
  $region1: #{tpu_custom_call.1} parent=0
    #allocation3 [shape = 'u8[131072]{0}', space=vmem, size = 0x20000, scoped, tag = 'input window, operand 0']
    #allocation4 [shape = 's32[2]{0}', space=sflag, size = 0x8, scoped, tag = 'scoped memory for tpu_custom_call.1']
    #allocation5 [shape = 'u8[4096]{0}', space=vmem, size = 0x1000, scoped, tag = 'input window, operand 1, single buffered']
    #allocation6 [shape = 's32[1]{0}', space=sflag, size = 0x4, scoped, tag = 'scoped memory for tpu_custom_call.1']
    %10 = vsyncpa [#allocation4], 0
    %s11 = scalar_lea.sflag [#allocation4], 1
    %12 = vsyncpa %s11, 0
    %13 = vsyncpa [#allocation6], 0
    loop: start=0, step=1, limit=4
    $region2: #{tpu_custom_call.1} parent=1 // loop_pre_header
      _
    $region3: #{tpu_custom_call.1} parent=1 // loop_header
      %s15 = sphi 0, %s19
      %p16 = scmp.ge.s32.totalorder %s15, 4
      %s25 = sphi 0, %s27
      %s28 = sphi 0, %s25
      %s29 = sphi 0, %s28
      %s45 = sphi 0, %s29
      %s49 = sphi 0, %s49
      %s51 = sphi 0, %s49
      %s52 = sphi 0, %s51
      %s66 = sphi 0, %s52
      %s70 = sphi 0, %s70
      %s72 = sphi 0, %s70
      %s73 = sphi 0, %s72
      %s87 = sphi 0, %s73
      %s93 = sphi 0, %s95
      %s96 = sphi 0, %s93
      %s97 = sphi 0, %s96
      %s113 = sphi 0, %s97
    $region4: #{tpu_custom_call.1} parent=1 // loop_header_branch
      %18 = sbr.rel (%p16) target = $region8
    $region5: #{tpu_custom_call.1} parent=1 // loop_body
      %s20 = ssub.s32 %s15, 1
      %s21 = ssub.s32 %s15, 2
      %s22 = sadd.s32 %s15, 1
      %s23 = ssub.s32 %s15, %s22
      %p24 = scmp.eq.s32.totalorder %s23, 0
      %s26 = sadd.s32 %s25, 1
      %s27 = scalar_select %p24, %s25, %s26
      %p30 = pneg %p24
      %p31 = scmp.eq.s32.totalorder %s15, 1
      %p32 = por %p30, %p31
      %p33 = scmp.ne.s32.totalorder %s25, %s28
      %p34 = scmp.eq.s32.totalorder %s15, 0
      %p35 = por %p33, %p34
      %p36 = scmp.ne.s32.totalorder %s25, %s28
      %p37 = scmp.eq.s32.totalorder %s20, 1
      %p38 = por %p36, %p37
      %p39 = scmp.ne.s32.totalorder %s28, %s29
      %p40 = scmp.eq.s32.totalorder %s20, 0
      %p41 = por %p39, %p40
      %p42 = scmp.ne.s32.totalorder %s28, %s29
      %p43 = scmp.eq.s32.totalorder %s21, 1
      %p44 = por %p42, %p43
      %p46 = scmp.ne.s32.totalorder %s29, %s45
      %p47 = scmp.eq.s32.totalorder %s21, 0
      %p48 = por %p46, %p47
      %s50 = sadd.s32 %s49, 1
      %p53 = scmp.eq.s32.totalorder %s15, 1
      %p54 = scmp.ne.s32.totalorder %s49, %s51
      %p55 = scmp.eq.s32.totalorder %s15, 0
      %p56 = por %p54, %p55
      %p57 = scmp.ne.s32.totalorder %s49, %s51
      %p58 = scmp.eq.s32.totalorder %s20, 1
      %p59 = por %p57, %p58
      %p60 = scmp.ne.s32.totalorder %s51, %s52
      %p61 = scmp.eq.s32.totalorder %s20, 0
      %p62 = por %p60, %p61
      %p63 = scmp.ne.s32.totalorder %s51, %s52
      %p64 = scmp.eq.s32.totalorder %s21, 1
      %p65 = por %p63, %p64
      %p67 = scmp.ne.s32.totalorder %s52, %s66
      %p68 = scmp.eq.s32.totalorder %s21, 0
      %p69 = por %p67, %p68
      %s71 = sadd.s32 %s70, 1
      %p74 = scmp.eq.s32.totalorder %s15, 1
      %p75 = scmp.ne.s32.totalorder %s70, %s72
      %p76 = scmp.eq.s32.totalorder %s15, 0
      %p77 = por %p75, %p76
      %p78 = scmp.ne.s32.totalorder %s70, %s72
      %p79 = scmp.eq.s32.totalorder %s20, 1
      %p80 = por %p78, %p79
      %p81 = scmp.ne.s32.totalorder %s72, %s73
      %p82 = scmp.eq.s32.totalorder %s20, 0
      %p83 = por %p81, %p82
      %p84 = scmp.ne.s32.totalorder %s72, %s73
      %p85 = scmp.eq.s32.totalorder %s21, 1
      %p86 = por %p84, %p85
      %p88 = scmp.ne.s32.totalorder %s73, %s87
      %p89 = scmp.eq.s32.totalorder %s21, 0
      %p90 = por %p88, %p89
      %s91 = ssub.s32 %s15, %s22
      %p92 = scmp.eq.s32.totalorder %s91, 0
      %s94 = sadd.s32 %s93, 1
      %s95 = scalar_select %p92, %s93, %s94
      %p98 = pneg %p92
      %p99 = scmp.eq.s32.totalorder %s15, 1
      %p100 = por %p98, %p99
      %p101 = scmp.ne.s32.totalorder %s93, %s96
      %p102 = scmp.eq.s32.totalorder %s15, 0
      %p103 = por %p101, %p102
      %p104 = scmp.ne.s32.totalorder %s93, %s96
      %p105 = scmp.eq.s32.totalorder %s20, 1
      %p106 = por %p104, %p105
      %p107 = scmp.ne.s32.totalorder %s96, %s97
      %p108 = scmp.eq.s32.totalorder %s20, 0
      %p109 = por %p107, %p108
      %p110 = scmp.ne.s32.totalorder %s96, %s97
      %p111 = scmp.eq.s32.totalorder %s21, 1
      %p112 = por %p110, %p111
      %p114 = scmp.ne.s32.totalorder %s97, %s113
      %p115 = scmp.eq.s32.totalorder %s21, 0
      %p116 = por %p114, %p115
      %p117 = scmp.le.s32.totalorder 1, %s15
      %p118 = scmp.lt.s32.totalorder %s15, 3
      %p119 = pnand %p117, %p118
      %p120 = pneg %p119
      // Predicated region
      $region9: #{tpu_custom_call.1} parent=5 // pred_check
        _
      $region10: #{tpu_custom_call.1} parent=5 // pred_check_branch
        %122 = sbr.rel (%p119) target = $region12
      $region11: #{tpu_custom_call.1} parent=5 // pred_region
        %s123 = ssub.s32 %s15, 1
        // Predicated region
        $region13: #{tpu_custom_call.1} parent=11 // pred_check
          %p124 = pneg %p62
        $region14: #{tpu_custom_call.1} parent=11 // pred_check_branch
          %126 = sbr.rel (%p124) target = $region16
        $region15: #{tpu_custom_call.1} parent=11 // pred_region
          %s128 = ssub.s32 128, 128
          %129 = vsyncadd [#allocation6], %s128
          %s131 = sshll.u32 [#allocation5], 4
          %s132 = int_to_ptr.vmem [resolvable:$true] %s131
          %134 = dma.hbm_to_vmem [thread:$0]  %s1, 128, %s132, [#allocation6]
        $region16: #{tpu_custom_call.1} parent=11 // pred_fallthru
          _
        // Predicated region
        $region17: #{tpu_custom_call.1} parent=11 // pred_check
          %p135 = pneg %p83
        $region18: #{tpu_custom_call.1} parent=11 // pred_check_branch
          %137 = sbr.rel (%p135) target = $region20
        $region19: #{tpu_custom_call.1} parent=11 // pred_region
          _
        $region20: #{tpu_custom_call.1} parent=11 // pred_fallthru
          _
      $region12: #{tpu_custom_call.1} parent=5 // pred_fallthru
        _
      %p138 = scmp.lt.s32.totalorder %s15, 2
      // Predicated region
      $region21: #{tpu_custom_call.1} parent=5 // pred_check
        %p139 = pneg %p138
      $region22: #{tpu_custom_call.1} parent=5 // pred_check_branch
        %141 = sbr.rel (%p139) target = $region24
      $region23: #{tpu_custom_call.1} parent=5 // pred_region
        // Predicated region
        $region25: #{tpu_custom_call.1} parent=23 // pred_check
          %p142 = pneg %p35
        $region26: #{tpu_custom_call.1} parent=23 // pred_check_branch
          %144 = sbr.rel (%p142) target = $region28
        $region27: #{tpu_custom_call.1} parent=23 // pred_region
          %s145 = sand.u32 %s25, 1
          %s146 = scalar_lea.sflag [#allocation4], %s145
          %s147 = sand.u32 %s25, 1
          %s148 = smul.addr %s147, 128
          %s149 = scalar_lea.vmem [#allocation3], %s148
          %s150 = smul.u32 2, %s15
          %s152 = ssub.s32 2048, 2048
          %153 = vsyncadd %s146, %s152
          %s154 = smul.addr %s150, 8
          %s155 = smul.addr %s154, 128
          %s156 = scalar_lea.hbm %s0, %s155
          %s157 = sshll.u32 %s149, 4
          %s158 = int_to_ptr.vmem [resolvable:$true] %s157
          %163 = dma.hbm_to_vmem [thread:$0]  %s156, 2048, %s158, %s146, 1024, 1024, 64
        $region28: #{tpu_custom_call.1} parent=23 // pred_fallthru
          _
      $region24: #{tpu_custom_call.1} parent=5 // pred_fallthru
        _
      %p164 = scmp.le.s32.totalorder 1, %s15
      %p165 = scmp.lt.s32.totalorder %s15, 3
      %p166 = pnand %p164, %p165
      %p167 = pneg %p166
      // Predicated region
      $region29: #{tpu_custom_call.1} parent=5 // pred_check
        _
      $region30: #{tpu_custom_call.1} parent=5 // pred_check_branch
        %169 = sbr.rel (%p166) target = $region32
      $region31: #{tpu_custom_call.1} parent=5 // pred_region
        %s170 = ssub.s32 %s15, 1
        %s171 = sand.u32 %s28, 1
        %s172 = scalar_lea.sflag [#allocation4], %s171
        %s173 = sand.u32 %s28, 1
        %s174 = smul.addr %s173, 128
        %s175 = scalar_lea.vmem [#allocation3], %s174
        // Predicated region
        $region33: #{tpu_custom_call.1} parent=31 // pred_check
          %p176 = pneg %p41
        $region34: #{tpu_custom_call.1} parent=31 // pred_check_branch
          %178 = sbr.rel (%p176) target = $region36
        $region35: #{tpu_custom_call.1} parent=31 // pred_region
          %179 = dma.done %s172, 2048
        $region36: #{tpu_custom_call.1} parent=31 // pred_fallthru
          _
        // Predicated region
        $region37: #{tpu_custom_call.1} parent=31 // pred_check
          %p180 = pneg %p62
        $region38: #{tpu_custom_call.1} parent=31 // pred_check_branch
          %182 = sbr.rel (%p180) target = $region40
        $region39: #{tpu_custom_call.1} parent=31 // pred_region
          %183 = dma.done [#allocation6], 128
        $region40: #{tpu_custom_call.1} parent=31 // pred_fallthru
          _
        %s184 = sand.u32 %s28, 1
        %s185 = scalar_lea.sflag [#allocation4], %s184
        %s186 = sand.u32 %s28, 1
        %s187 = smul.addr %s186, 128
        %s188 = scalar_lea.vmem [#allocation3], %s187
        %p189 = pneg %p41
        %p190 = pneg %p38
        %p191 = pneg %p62
        %p192 = pneg %p59
        %p193 = pneg %p83
        %p194 = pneg %p80
        %p195 = pneg %p109
        %p196 = pneg %p106
        %s197 = smul.u32 2, %s20
        %p198 = scmp.lt.s32.totalorder %s197, 3
        %s199 = scalar_select %p198, %s197, 3
        %s200 = smul.addr %s199, 8
        %s201 = scalar_lea.vmem %s3, %s200
        %s202 = smul.u32 2, %s20
        %s203 = smul.u32 2, %s20
        %p204 = scmp.lt.s32.totalorder %s203, 3
        %s205 = scalar_select %p204, %s203, 3
        %s206 = smul.addr %s205, 8
        %s207 = scalar_lea.vmem %s3, %s206
        %s208 = smul.u32 2, %s20
        %v209 = vld [vmem:[%s175] sm:$0xff]
        %v210 = vld [vmem:[%s175 + $0x8] sm:$0xff]
        %v211 = vld [vmem:[%s175 + $0x10] sm:$0xff]
        %v212 = vld [vmem:[%s175 + $0x18] sm:$0xff]
        %v213 = vld [vmem:[%s175 + $0x20] sm:$0xff]
        %v214 = vld [vmem:[%s175 + $0x28] sm:$0xff]
        %v215 = vld [vmem:[%s175 + $0x30] sm:$0xff]
        %v216 = vld [vmem:[%s175 + $0x38] sm:$0xff]
        %v217 = vld [vmem:[%s175 + $0x40] sm:$0xff]
        %v218 = vld [vmem:[%s175 + $0x48] sm:$0xff]
        %v219 = vld [vmem:[%s175 + $0x50] sm:$0xff]
        %v220 = vld [vmem:[%s175 + $0x58] sm:$0xff]
        %v221 = vld [vmem:[%s175 + $0x60] sm:$0xff]
        %v222 = vld [vmem:[%s175 + $0x68] sm:$0xff]
        %v223 = vld [vmem:[%s175 + $0x70] sm:$0xff]
        %v224 = vld [vmem:[%s175 + $0x78] sm:$0xff]
        %v225 = vld [vmem:[#allocation5] sm:$0xff]
        %v227 = vlaneseq
        %v228 = vshrl.u32 %v227, 7
        %v229 = vsub.s32 0, %v228
        %v230 = vrot.slane %v225, %v229
        %v231 = vlaneseq
        %v232 = vshrl.u32 %v231, 7
        %v233 = vsub.s32 1, %v232
        %v234 = vrot.slane %v225, %v233
        %v235 = vlaneseq
        %v236 = vshrl.u32 %v235, 7
        %v237 = vsub.s32 2, %v236
        %v238 = vrot.slane %v225, %v237
        %v239 = vlaneseq
        %v240 = vshrl.u32 %v239, 7
        %v241 = vsub.s32 3, %v240
        %v242 = vrot.slane %v225, %v241
        %v243 = vlaneseq
        %v244 = vshrl.u32 %v243, 7
        %v245 = vsub.s32 4, %v244
        %v246 = vrot.slane %v225, %v245
        %v247 = vlaneseq
        %v248 = vshrl.u32 %v247, 7
        %v249 = vsub.s32 5, %v248
        %v250 = vrot.slane %v225, %v249
        %v251 = vlaneseq
        %v252 = vshrl.u32 %v251, 7
        %v253 = vsub.s32 6, %v252
        %v254 = vrot.slane %v225, %v253
        %v255 = vlaneseq
        %v256 = vshrl.u32 %v255, 7
        %v257 = vsub.s32 7, %v256
        %v258 = vrot.slane %v225, %v257
        %v267 = vmul.f32 %v209, %v230
        %v268 = vmul.f32 %v210, %v234
        %v269 = vmul.f32 %v211, %v238
        %v270 = vmul.f32 %v212, %v242
        %v271 = vmul.f32 %v213, %v246
        %v272 = vmul.f32 %v214, %v250
        %v273 = vmul.f32 %v215, %v254
        %v274 = vmul.f32 %v216, %v258
        %v275 = vmul.f32 %v217, %v230
        %v276 = vmul.f32 %v218, %v234
        %v277 = vmul.f32 %v219, %v238
        %v278 = vmul.f32 %v220, %v242
        %v279 = vmul.f32 %v221, %v246
        %v280 = vmul.f32 %v222, %v250
        %v281 = vmul.f32 %v223, %v254
        %v282 = vmul.f32 %v224, %v258
        %v283 = vadd.f32 %v267, %v268
        %v284 = vadd.f32 %v283, %v269
        %v285 = vadd.f32 %v284, %v270
        %v286 = vadd.f32 %v285, %v271
        %v287 = vadd.f32 %v286, %v272
        %v288 = vadd.f32 %v287, %v273
        %v289 = vadd.f32 %v288, %v274
        %290 = vadd.xlane.f32.xlu0 %v289
        %v291 = vpop.xlane.xlu0 %290
        %v292 = vadd.f32 %v275, %v276
        %v293 = vadd.f32 %v292, %v277
        %v294 = vadd.f32 %v293, %v278
        %v295 = vadd.f32 %v294, %v279
        %v296 = vadd.f32 %v295, %v280
        %v297 = vadd.f32 %v296, %v281
        %v298 = vadd.f32 %v297, %v282
        %299 = vadd.xlane.f32.xlu0 %v298
        %v300 = vpop.xlane.xlu0 %299
        %v301 = vld [vmem:[#allocation2] sm:$0x1]
        %v303 = vlaneseq
        %v304 = vshrl.u32 %v303, 7
        %v305 = vsub.s32 0, %v304
        %v306 = vrot.slane %v301, %v305
        %v308 = vadd.f32 %v291, %v306
        %v309 = vadd.f32 %v300, %v306
        %v310 = vxor.u32 %v308, 2147483648
        %v311 = vxor.u32 %v309, 2147483648
        %v312 = vmul.f32 %v310, 1.442695
        %v313 = vpow.pop %v312
        %v314 = vmul.f32 %v311, 1.442695
        %v315 = vpow.pop %v314
        %v316 = vadd.f32 %v313, 1.0
        %v317 = vadd.f32 %v315, 1.0
        %v318 = vrcp.pop %v316
        %v319 = vmul.f32 1.0, %v318
        %v320 = vrcp.pop %v317
        %v321 = vmul.f32 1.0, %v320
        %vm322 = vcmask 7168
        %323 = vst.msk [vmem:[%s207] sm:$0xff] %vm322, %v319
        %324 = vst.msk [vmem:[%s207 + $0x8] sm:$0xff] %vm322, %v321
        %s325 = smul.u32 2, %s20
        %p326 = scmp.lt.s32.totalorder %s325, 3
        %s327 = scalar_select %p326, %s325, 3
        %s328 = smul.addr %s327, 8
        %s329 = scalar_lea.vmem %s3, %s328
        // Predicated region
        $region41: #{tpu_custom_call.1} parent=31 // pred_check
          %p330 = pneg %p106
        $region42: #{tpu_custom_call.1} parent=31 // pred_check_branch
          %332 = sbr.rel (%p330) target = $region44
        $region43: #{tpu_custom_call.1} parent=31 // pred_region
          %s333 = smul.u32 2, %s20
        $region44: #{tpu_custom_call.1} parent=31 // pred_fallthru
          _
      $region32: #{tpu_custom_call.1} parent=5 // pred_fallthru
        _
      %p334 = scmp.le.s32.totalorder 2, %s15
      // Predicated region
      $region45: #{tpu_custom_call.1} parent=5 // pred_check
        %p335 = pneg %p334
      $region46: #{tpu_custom_call.1} parent=5 // pred_check_branch
        %337 = sbr.rel (%p335) target = $region48
      $region47: #{tpu_custom_call.1} parent=5 // pred_region
        %s338 = ssub.s32 %s15, 2
        // Predicated region
        $region49: #{tpu_custom_call.1} parent=47 // pred_check
          %p339 = pneg %p112
        $region50: #{tpu_custom_call.1} parent=47 // pred_check_branch
          %341 = sbr.rel (%p339) target = $region52
        $region51: #{tpu_custom_call.1} parent=47 // pred_region
          %s342 = smul.u32 2, %s21
          %p343 = scmp.lt.s32.totalorder %s342, 3
          %s344 = scalar_select %p343, %s342, 3
          %s345 = smul.addr %s344, 8
          %s346 = scalar_lea.vmem %s3, %s345
        $region52: #{tpu_custom_call.1} parent=47 // pred_fallthru
          _
      $region48: #{tpu_custom_call.1} parent=5 // pred_fallthru
        _
    $region6: #{tpu_custom_call.1} parent=1 // loop_footer
      %s19 = sadd.s32 1, %s15
    $region7: #{tpu_custom_call.1} parent=1 // loop_footer_branch
      %14 = sbr.rel target = $region3
    $region8: #{tpu_custom_call.1} parent=1 // loop_exit
      _
    %347 = vsyncpa [#allocation4], 1
    %s348 = scalar_lea.sflag [#allocation4], 1
    %349 = vsyncpa %s348, 1
    %350 = vsyncpa [#allocation6], 1

</llo_original>
